<compile_context>
chip_gen: v7x
topology: tpu7x:2x2x1
jax: 0.10.0
libtpu: 0.0.40
codegen_flags: <defaults>
</compile_context>

<pallas_src>
import jax
import jax.numpy as jnp
from jax.experimental import pallas as pl
from jax.experimental.pallas import tpu as pltpu

# Small shapes consistent with the module (n_embd / block_size scaled down).
N_EMBD = 32       # embedding dim (module uses 2000)
HEAD_SIZE = 16    # head_size argument
T = 8             # sequence length (<= block_size)
B = 2             # batch

LANE = 128        # per-projection lane tile (Q/K/V each own one 128-lane tile)
_NEG_BIG = -1e30  # large finite negative for the causal mask
# Invariant: the diagonal is always unmasked, so every softmax row has at
# least one un-masked logit and the row max stays well away from _NEG_BIG.


def _head_kernel(x_ref, wqkv_ref, o_ref):
    # x_ref: (1, T, C)   wqkv_ref: (C, 3*LANE)   o_ref: (1, T, LANE)
    Tq = x_ref.shape[1]
    lane = o_ref.shape[-1]

    x = x_ref[0]                                                  # (T, C)

    # Fused QKV projection: one MXU matmul.  Scale is pre-folded into Wq,
    # and each projection sits in its own 128-lane tile (pad lanes are zero).
    qkv = jnp.dot(x, wqkv_ref[...],
                  preferred_element_type=jnp.float32)             # (T, 3*LANE)

    # Tile-aligned slices -> no cross-lane shuffle work.
    q = qkv[:, 0 * lane:1 * lane]                                 # (T, 128)
    k = qkv[:, 1 * lane:2 * lane]                                 # (T, 128)
    v = qkv[:, 2 * lane:3 * lane]                                 # (T, 128)

    # Scores: contraction over the padded lane dim (zero lanes contribute 0);
    # no explicit k transpose through the XLU.
    wei = jax.lax.dot_general(q, k, (((1,), (1,)), ((), ())),
                              preferred_element_type=jnp.float32)  # (T, T)

    # Causal mask: position i attends to j <= i.
    row = jax.lax.broadcasted_iota(jnp.int32, (Tq, Tq), 0)
    col = jax.lax.broadcasted_iota(jnp.int32, (Tq, Tq), 1)
    wei = jnp.where(row >= col, wei, _NEG_BIG)

    # Numerically-stable softmax; reciprocal on the EUP.
    m = jnp.max(wei, axis=-1, keepdims=True)
    e = jnp.exp(wei - m)
    denom = jnp.sum(e, axis=-1, keepdims=True)
    p = e * pl.reciprocal(denom, approx=True)

    # TODO(synk): nn.Dropout(p=0.2) is identity in eval mode; not applied.

    # PV matmul: output is lane-dense (T, 128); lanes >= head_size are zero
    # because the V weight pad columns are zero.  Full unmasked vector stores.
    out = jnp.dot(p, v, preferred_element_type=jnp.float32)
    o_ref[0] = out.astype(o_ref.dtype)


def head_attention(x, wqkv_padded, head_size):
    """x: (B, T, C); wqkv_padded: (C, 3*LANE) with [Wq*scale | Wk | Wv] in
    lanes [0:D], [LANE:LANE+D], [2*LANE:2*LANE+D] and zeros elsewhere."""
    Bx, Tx, C = x.shape
    lane = wqkv_padded.shape[1] // 3

    out_padded = pl.pallas_call(
        _head_kernel,
        out_shape=jax.ShapeDtypeStruct((Bx, Tx, lane), x.dtype),
        grid=(Bx,),
        in_specs=[
            # One batch element per grid step (double-buffered DMA under compute).
            pl.BlockSpec((1, Tx, C), lambda b: (b, 0, 0)),
            # Weight stays VMEM-resident across the whole grid.
            pl.BlockSpec((C, 3 * lane), lambda b: (0, 0)),
        ],
        out_specs=pl.BlockSpec((1, Tx, lane), lambda b: (b, 0, 0)),
        compiler_params=pltpu.CompilerParams(
            dimension_semantics=("parallel",)),
    )(x, wqkv_padded)

    # Lane-dense slab stored by the kernel; slice back to head_size here.
    return out_padded[..., :head_size]


def _reference(x, wq, wk, wv):
    """Pure-JAX reference mirroring the PyTorch Head.forward (eval mode)."""
    Tq = x.shape[1]
    q = x @ wq
    k = x @ wk
    v = x @ wv
    wei = (q @ jnp.swapaxes(k, -1, -2)) * (k.shape[-1] ** -0.5)
    tril = jnp.tril(jnp.ones((Tq, Tq), jnp.float32))
    wei = jnp.where(tril == 0, -jnp.inf, wei)
    wei = jax.nn.softmax(wei, axis=-1)
    return wei @ v


if __name__ == "__main__":
    key = jax.random.PRNGKey(0)
    kx, kq, kk, kv = jax.random.split(key, 4)

    # PyTorch-Linear-style uniform init, weights stored pre-transposed (C, D).
    bound = 1.0 / (N_EMBD ** 0.5)
    x = jax.random.normal(kx, (B, T, N_EMBD), dtype=jnp.float32)
    wq = jax.random.uniform(kq, (N_EMBD, HEAD_SIZE),
                            minval=-bound, maxval=bound, dtype=jnp.float32)
    wk = jax.random.uniform(kk, (N_EMBD, HEAD_SIZE),
                            minval=-bound, maxval=bound, dtype=jnp.float32)
    wv = jax.random.uniform(kv, (N_EMBD, HEAD_SIZE),
                            minval=-bound, maxval=bound, dtype=jnp.float32)

    # Lane-padded fused QKV weight: each projection in its own 128-lane tile;
    # the 1/sqrt(head_size) scale is folded into the Q columns once, host-side.
    scale = HEAD_SIZE ** -0.5
    wqkv = jnp.zeros((N_EMBD, 3 * LANE), dtype=jnp.float32)
    wqkv = wqkv.at[:, 0 * LANE:0 * LANE + HEAD_SIZE].set(wq * scale)
    wqkv = wqkv.at[:, 1 * LANE:1 * LANE + HEAD_SIZE].set(wk)
    wqkv = wqkv.at[:, 2 * LANE:2 * LANE + HEAD_SIZE].set(wv)

    out = head_attention(x, wqkv, HEAD_SIZE)
    out = jax.block_until_ready(out)

    ref = _reference(x, wq, wk, wv)
    assert out.shape == (B, T, HEAD_SIZE)
    # Tolerance accounts for the EUP approximate reciprocal in the softmax.
    assert jnp.allclose(out, ref, atol=1e-2, rtol=1e-2), "mismatch vs reference"

    print("KERNEL_OK")
</pallas_src>

<mosaic_0001>
module attributes {stable_mosaic.version = 11 : i64} {
  func.func @_head_kernel(%arg0: i32, %arg1: memref<1x8x32xf32, #tpu.memory_space<vmem>>, %arg2: memref<32x384xf32, #tpu.memory_space<vmem>>, %arg3: memref<1x8x128xf32, #tpu.memory_space<vmem>>) attributes {dimension_semantics = [#tpu.dimension_semantics<parallel>], iteration_bounds = array<i64: 2>, scalar_prefetch = 0 : i64, scratch_operands = 0 : i64, tpu.core_type = #tpu.core_type<tc>, window_params = [{transform_indices = @transform_0, window_bounds = array<i64: 1, 8, 32>}, {pipeline_mode = #tpu.pipeline_mode<synchronous>, transform_indices = @transform_1, window_bounds = array<i64: 32, 384>}, {transform_indices = @transform_2, window_bounds = array<i64: 1, 8, 128>}]} {
    %c0 = arith.constant 0 : index
    %c0_0 = arith.constant 0 : index
    %c0_1 = arith.constant 0 : index
    %0 = vector.load %arg1[%c0, %c0_0, %c0_1] : memref<1x8x32xf32, #tpu.memory_space<vmem>>, vector<1x8x32xf32>
    %1 = vector.shape_cast %0 : vector<1x8x32xf32> to vector<8x32xf32>
    %c0_2 = arith.constant 0 : index
    %c0_3 = arith.constant 0 : index
    %2 = vector.load %arg2[%c0_2, %c0_3] : memref<32x384xf32, #tpu.memory_space<vmem>>, vector<32x384xf32>
    %cst = arith.constant dense<0.000000e+00> : vector<8x384xf32>
    %3 = tpu.matmul %1, %2, %cst {dimension_numbers = #tpu.dot_dimension_numbers<[1], [0], [0], [1], [0, 0, 1, 1], [], []>} : vector<8x32xf32>, vector<32x384xf32>, vector<8x384xf32> -> vector<8x384xf32>
    %4 = vector.extract_strided_slice %3 {offsets = [0, 0], sizes = [8, 128], strides = [1, 1]} : vector<8x384xf32> to vector<8x128xf32>
    %5 = vector.extract_strided_slice %3 {offsets = [0, 128], sizes = [8, 128], strides = [1, 1]} : vector<8x384xf32> to vector<8x128xf32>
    %6 = vector.extract_strided_slice %3 {offsets = [0, 256], sizes = [8, 128], strides = [1, 1]} : vector<8x384xf32> to vector<8x128xf32>
    %cst_4 = arith.constant dense<0.000000e+00> : vector<8x8xf32>
    %7 = tpu.matmul %4, %5, %cst_4 {dimension_numbers = #tpu.dot_dimension_numbers<[1], [1], [0], [0], [0, 0, 1, 0], [], []>} : vector<8x128xf32>, vector<8x128xf32>, vector<8x8xf32> -> vector<8x8xf32>
    %8 = tpu.iota {dimensions = array<i32: 0>} : vector<8x8xi32>
    %9 = tpu.iota {dimensions = array<i32: 1>} : vector<8x8xi32>
    %10 = arith.cmpi sge, %8, %9 : vector<8x8xi32>
    %cst_5 = arith.constant -1.000000e+30 : f32
    %11 = vector.broadcast %cst_5 : f32 to vector<8x8xf32>
    %12 = arith.select %10, %7, %11 : vector<8x8xi1>, vector<8x8xf32>
    %cst_6 = arith.constant dense<0xFF800000> : vector<8xf32>
    %13 = vector.multi_reduction <maximumf>, %12, %cst_6 [1] : vector<8x8xf32> to vector<8xf32>
    %14 = vector.shape_cast %13 : vector<8xf32> to vector<8x1xf32>
    %15 = vector.broadcast %14 : vector<8x1xf32> to vector<8x8xf32>
    %16 = arith.subf %12, %15 : vector<8x8xf32>
    %17 = math.exp %16 : vector<8x8xf32>
    %cst_7 = arith.constant dense<0.000000e+00> : vector<8xf32>
    %18 = vector.multi_reduction <add>, %17, %cst_7 [1] : vector<8x8xf32> to vector<8xf32>
    %19 = vector.shape_cast %18 : vector<8xf32> to vector<8x1xf32>
    %20 = tpu.reciprocal %19 {approx = true} : vector<8x1xf32> -> vector<8x1xf32>
    %21 = vector.broadcast %20 : vector<8x1xf32> to vector<8x8xf32>
    %22 = arith.mulf %17, %21 : vector<8x8xf32>
    %cst_8 = arith.constant dense<0.000000e+00> : vector<8x128xf32>
    %23 = tpu.matmul %22, %6, %cst_8 {dimension_numbers = #tpu.dot_dimension_numbers<[1], [0], [0], [1], [0, 0, 1, 1], [], []>} : vector<8x8xf32>, vector<8x128xf32>, vector<8x128xf32> -> vector<8x128xf32>
    %c0_9 = arith.constant 0 : index
    %c0_10 = arith.constant 0 : index
    %c0_11 = arith.constant 0 : index
    %24 = vector.load %arg3[%c0_9, %c0_10, %c0_11] : memref<1x8x128xf32, #tpu.memory_space<vmem>>, vector<1x8x128xf32>
    %25 = vector.shape_cast %24 : vector<1x8x128xf32> to vector<8x128xf32>
    %26 = vector.shape_cast %23 : vector<8x128xf32> to vector<1x8x128xf32>
    tpu.vector_store %arg3[%c0_9, %c0_10, %c0_11], %26 {strides = array<i32>} : memref<1x8x128xf32, #tpu.memory_space<vmem>>, vector<1x8x128xf32>,
    return
  }
  func.func @transform_0(%arg0: i32) -> (i32, i32, i32) {
    %c0_i32 = arith.constant 0 : i32
    %c0_i32_0 = arith.constant 0 : i32
    %c0_i32_1 = arith.constant 0 : i32
    return %arg0, %c0_i32, %c0_i32_0 : i32, i32, i32
  }
  func.func @transform_1(%arg0: i32) -> (i32, i32) {
    %c0_i32 = arith.constant 0 : i32
    %c0_i32_0 = arith.constant 0 : i32
    %c0_i32_1 = arith.constant 0 : i32
    return %c0_i32, %c0_i32_0 : i32, i32
  }
  func.func @transform_2(%arg0: i32) -> (i32, i32, i32) {
    %c0_i32 = arith.constant 0 : i32
    %c0_i32_0 = arith.constant 0 : i32
    %c0_i32_1 = arith.constant 0 : i32
    return %arg0, %c0_i32, %c0_i32_0 : i32, i32, i32
  }
}

</mosaic_0001>

<llo_original>
// kernel: tpu_custom_call.1
$region0: #{tpu_custom_call.1}
  #allocation0 [shape = 'u32[]', space=smem, size = 0x4, offset = 0x4, fixed_abs, tag = 'smem constant byte address 0x4 - core index']
  #allocation1 [shape = 'u32[144,128]{1,0:T(1,128)}', space=vmem, size = 0x12000, scoped, tag = 'internal scratch']
  %s0 = inlined_call_operand.hbm [shape: f32[2,8,32], index: 0, kind: input, shape index: {}]
  %s1 = inlined_call_operand.hbm [shape: f32[32,384], index: 1, kind: input, shape index: {}]
  %s2 = inlined_call_operand.hbm [shape: f32[2,8,128], index: 2, kind: output, shape index: {}]
  %s3 = sld [smem:[#allocation0]]
  $region49: #{tpu_custom_call.1} parent=0
    _
  %s5 = ssub.s32 1, %s3
  %s6 = scalar_select 0, %s5, %s3
  $region1: #{tpu_custom_call.1} parent=0
    #allocation2 [shape = 'u8[8192]{0}', space=vmem, size = 0x2000, scoped, tag = 'input window, operand 0']
    #allocation3 [shape = 's32[2]{0}', space=sflag, size = 0x8, scoped, tag = 'scoped memory for tpu_custom_call.1']
    #allocation4 [shape = 's32[2]{0}', space=sflag, size = 0x8, scoped, tag = 'scoped memory for tpu_custom_call.1']
    #allocation5 [shape = 'u8[49152]{0}', space=vmem, size = 0xc000, scoped, tag = 'input window, operand 1, single buffered']
    #allocation6 [shape = 's32[1]{0}', space=sflag, size = 0x4, scoped, tag = 'scoped memory for tpu_custom_call.1']
    #allocation7 [shape = 'u8[8192]{0}', space=vmem, size = 0x2000, scoped, tag = 'output window, operand 0']
    %7 = vsyncpa [#allocation3], 0
    %s8 = scalar_lea.sflag [#allocation3], 1
    %9 = vsyncpa %s8, 0
    %10 = vsyncpa [#allocation6], 0
    %11 = vsyncpa [#allocation4], 0
    %s12 = scalar_lea.sflag [#allocation4], 1
    %13 = vsyncpa %s12, 0
    loop: start=0, step=1, limit=4
    $region2: #{tpu_custom_call.1} parent=1 // loop_pre_header
      _
    $region3: #{tpu_custom_call.1} parent=1 // loop_header
      %s15 = sphi 0, %s19
      %p16 = scmp.ge.s32.totalorder %s15, 4
      %s25 = sphi 0, %s27
      %s28 = sphi 0, %s25
      %s29 = sphi 0, %s28
      %s45 = sphi 0, %s29
      %s49 = sphi 0, %s49
      %s51 = sphi 0, %s49
      %s52 = sphi 0, %s51
      %s66 = sphi 0, %s52
      %s72 = sphi 0, %s74
      %s75 = sphi 0, %s72
      %s76 = sphi 0, %s75
      %s92 = sphi 0, %s76
    $region4: #{tpu_custom_call.1} parent=1 // loop_header_branch
      %18 = sbr.rel (%p16) target = $region8
    $region5: #{tpu_custom_call.1} parent=1 // loop_body
      %s20 = ssub.s32 %s15, 1
      %s21 = ssub.s32 %s15, 2
      %s22 = sadd.s32 %s15, 1
      %s23 = ssub.s32 %s15, %s22
      %p24 = scmp.eq.s32.totalorder %s23, 0
      %s26 = sadd.s32 %s25, 1
      %s27 = scalar_select %p24, %s25, %s26
      %p30 = pneg %p24
      %p31 = scmp.eq.s32.totalorder %s15, 1
      %p32 = por %p30, %p31
      %p33 = scmp.ne.s32.totalorder %s25, %s28
      %p34 = scmp.eq.s32.totalorder %s15, 0
      %p35 = por %p33, %p34
      %p36 = scmp.ne.s32.totalorder %s25, %s28
      %p37 = scmp.eq.s32.totalorder %s20, 1
      %p38 = por %p36, %p37
      %p39 = scmp.ne.s32.totalorder %s28, %s29
      %p40 = scmp.eq.s32.totalorder %s20, 0
      %p41 = por %p39, %p40
      %p42 = scmp.ne.s32.totalorder %s28, %s29
      %p43 = scmp.eq.s32.totalorder %s21, 1
      %p44 = por %p42, %p43
      %p46 = scmp.ne.s32.totalorder %s29, %s45
      %p47 = scmp.eq.s32.totalorder %s21, 0
      %p48 = por %p46, %p47
      %s50 = sadd.s32 %s49, 1
      %p53 = scmp.eq.s32.totalorder %s15, 1
      %p54 = scmp.ne.s32.totalorder %s49, %s51
      %p55 = scmp.eq.s32.totalorder %s15, 0
      %p56 = por %p54, %p55
      %p57 = scmp.ne.s32.totalorder %s49, %s51
      %p58 = scmp.eq.s32.totalorder %s20, 1
      %p59 = por %p57, %p58
      %p60 = scmp.ne.s32.totalorder %s51, %s52
      %p61 = scmp.eq.s32.totalorder %s20, 0
      %p62 = por %p60, %p61
      %p63 = scmp.ne.s32.totalorder %s51, %s52
      %p64 = scmp.eq.s32.totalorder %s21, 1
      %p65 = por %p63, %p64
      %p67 = scmp.ne.s32.totalorder %s52, %s66
      %p68 = scmp.eq.s32.totalorder %s21, 0
      %p69 = por %p67, %p68
      %s70 = ssub.s32 %s15, %s22
      %p71 = scmp.eq.s32.totalorder %s70, 0
      %s73 = sadd.s32 %s72, 1
      %s74 = scalar_select %p71, %s72, %s73
      %p77 = pneg %p71
      %p78 = scmp.eq.s32.totalorder %s15, 1
      %p79 = por %p77, %p78
      %p80 = scmp.ne.s32.totalorder %s72, %s75
      %p81 = scmp.eq.s32.totalorder %s15, 0
      %p82 = por %p80, %p81
      %p83 = scmp.ne.s32.totalorder %s72, %s75
      %p84 = scmp.eq.s32.totalorder %s20, 1
      %p85 = por %p83, %p84
      %p86 = scmp.ne.s32.totalorder %s75, %s76
      %p87 = scmp.eq.s32.totalorder %s20, 0
      %p88 = por %p86, %p87
      %p89 = scmp.ne.s32.totalorder %s75, %s76
      %p90 = scmp.eq.s32.totalorder %s21, 1
      %p91 = por %p89, %p90
      %p93 = scmp.ne.s32.totalorder %s76, %s92
      %p94 = scmp.eq.s32.totalorder %s21, 0
      %p95 = por %p93, %p94
      %p96 = scmp.le.s32.totalorder 1, %s15
      %p97 = scmp.lt.s32.totalorder %s15, 3
      %p98 = pnand %p96, %p97
      %p99 = pneg %p98
      // Predicated region
      $region9: #{tpu_custom_call.1} parent=5 // pred_check
        _
      $region10: #{tpu_custom_call.1} parent=5 // pred_check_branch
        %101 = sbr.rel (%p98) target = $region12
      $region11: #{tpu_custom_call.1} parent=5 // pred_region
        %s102 = ssub.s32 %s15, 1
        // Predicated region
        $region13: #{tpu_custom_call.1} parent=11 // pred_check
          %p103 = pneg %p62
        $region14: #{tpu_custom_call.1} parent=11 // pred_check_branch
          %105 = sbr.rel (%p103) target = $region16
        $region15: #{tpu_custom_call.1} parent=11 // pred_region
          %s107 = ssub.s32 1536, 1536
          %108 = vsyncadd [#allocation6], %s107
          %s109 = sshll.u32 [#allocation5], 4
          %s110 = int_to_ptr.vmem [resolvable:$true] %s109
          %115 = dma.hbm_to_vmem [thread:$0]  %s1, 1536, %s110, [#allocation6], 384, 384, 24
        $region16: #{tpu_custom_call.1} parent=11 // pred_fallthru
          _
      $region12: #{tpu_custom_call.1} parent=5 // pred_fallthru
        _
      %p116 = scmp.lt.s32.totalorder %s15, 2
      // Predicated region
      $region17: #{tpu_custom_call.1} parent=5 // pred_check
        %p117 = pneg %p116
      $region18: #{tpu_custom_call.1} parent=5 // pred_check_branch
        %119 = sbr.rel (%p117) target = $region20
      $region19: #{tpu_custom_call.1} parent=5 // pred_region
        // Predicated region
        $region21: #{tpu_custom_call.1} parent=19 // pred_check
          %p120 = pneg %p35
        $region22: #{tpu_custom_call.1} parent=19 // pred_check_branch
          %122 = sbr.rel (%p120) target = $region24
        $region23: #{tpu_custom_call.1} parent=19 // pred_region
          %s123 = sand.u32 %s25, 1
          %s124 = scalar_lea.sflag [#allocation3], %s123
          %s125 = sand.u32 %s25, 1
          %s126 = smul.addr %s125, 8
          %s127 = scalar_lea.vmem [#allocation2], %s126
          %s129 = ssub.s32 128, 128
          %130 = vsyncadd %s124, %s129
          %s131 = smul.addr %s15, 128
          %s132 = scalar_lea.hbm %s0, %s131
          %s134 = sshll.u32 %s127, 4
          %s135 = int_to_ptr.vmem [resolvable:$true] %s134
          %137 = dma.hbm_to_vmem [thread:$0]  %s132, 128, %s135, %s124
        $region24: #{tpu_custom_call.1} parent=19 // pred_fallthru
          _
      $region20: #{tpu_custom_call.1} parent=5 // pred_fallthru
        _
      %p138 = scmp.le.s32.totalorder 1, %s15
      %p139 = scmp.lt.s32.totalorder %s15, 3
      %p140 = pnand %p138, %p139
      %p141 = pneg %p140
      // Predicated region
      $region25: #{tpu_custom_call.1} parent=5 // pred_check
        _
      $region26: #{tpu_custom_call.1} parent=5 // pred_check_branch
        %143 = sbr.rel (%p140) target = $region28
      $region27: #{tpu_custom_call.1} parent=5 // pred_region
        %s144 = ssub.s32 %s15, 1
        %s145 = sand.u32 %s28, 1
        %s146 = scalar_lea.sflag [#allocation3], %s145
        %s147 = sand.u32 %s28, 1
        %s148 = smul.addr %s147, 8
        %s149 = scalar_lea.vmem [#allocation2], %s148
        // Predicated region
        $region29: #{tpu_custom_call.1} parent=27 // pred_check
          %p150 = pneg %p41
        $region30: #{tpu_custom_call.1} parent=27 // pred_check_branch
          %152 = sbr.rel (%p150) target = $region32
        $region31: #{tpu_custom_call.1} parent=27 // pred_region
          %153 = dma.done %s146, 128
        $region32: #{tpu_custom_call.1} parent=27 // pred_fallthru
          _
        // Predicated region
        $region33: #{tpu_custom_call.1} parent=27 // pred_check
          %p154 = pneg %p62
        $region34: #{tpu_custom_call.1} parent=27 // pred_check_branch
          %156 = sbr.rel (%p154) target = $region36
        $region35: #{tpu_custom_call.1} parent=27 // pred_region
          %157 = dma.done [#allocation6], 1536
        $region36: #{tpu_custom_call.1} parent=27 // pred_fallthru
          _
        %s158 = sand.u32 %s28, 1
        %s159 = scalar_lea.sflag [#allocation3], %s158
        %s160 = sand.u32 %s28, 1
        %s161 = smul.addr %s160, 8
        %s162 = scalar_lea.vmem [#allocation2], %s161
        %p163 = pneg %p41
        %p164 = pneg %p38
        %p165 = pneg %p62
        %p166 = pneg %p59
        %p167 = pneg %p88
        %p168 = pneg %p85
        %s169 = sand.u32 %s75, 1
        %s170 = scalar_lea.sflag [#allocation4], %s169
        %s171 = sand.u32 %s75, 1
        %s172 = smul.addr %s171, 8
        %s173 = scalar_lea.vmem [#allocation7], %s172
        %v174 = vld [vmem:[%s149] sm:$0xff]
        %v175 = vld [vmem:[#allocation5] sm:$0xff]
        %v176 = vld [vmem:[#allocation5 + $0x8] sm:$0xff]
        %v177 = vld [vmem:[#allocation5 + $0x10] sm:$0xff]
        %v178 = vld [vmem:[#allocation5 + $0x18] sm:$0xff]
        %v179 = vld [vmem:[#allocation5 + $0x20] sm:$0xff]
        %v180 = vld [vmem:[#allocation5 + $0x28] sm:$0xff]
        %v181 = vld [vmem:[#allocation5 + $0x30] sm:$0xff]
        %v182 = vld [vmem:[#allocation5 + $0x38] sm:$0xff]
        %v183 = vld [vmem:[#allocation5 + $0x40] sm:$0xff]
        %v184 = vld [vmem:[#allocation5 + $0x48] sm:$0xff]
        %v185 = vld [vmem:[#allocation5 + $0x50] sm:$0xff]
        %v186 = vld [vmem:[#allocation5 + $0x58] sm:$0xff]
        %vm187 = vcmask 261120
        %v189 = vsel %vm187, %v174, 0
        %191 = vmatprep.subr.mxu0 %v176
        %192 = vmatpush1.msra.mxu0 %v175
        %193 = vmatprep.subr.mxu0 %v179
        %194 = vmatpush1.msra.mxu0 %v178
        %195 = vmatprep.subr.mxu0 %v182
        %196 = vmatpush1.msra.mxu0 %v181
        %197 = vmatprep.subr.mxu0 %v185
        %198 = vmatpush1.msra.mxu0 %v184
        %199 = vmatprep.subr.mxu0 0.0
        %200 = vmatpush1.msra.mxu0 0.0
        %201 = vmatprep.subr.mxu0 0.0
        %202 = vmatpush1.msra.mxu0 0.0
        %203 = vmatprep.subr.mxu0 0.0
        %204 = vmatpush1.msra.mxu0 0.0
        %205 = vmatprep.subr.mxu0 0.0
        %206 = vmatpush1.msra.mxu0 0.0
        %207 = vmatprep.subr.mxu0 0.0
        %208 = vmatpush1.msra.mxu0 0.0
        %209 = vmatprep.subr.mxu0 0.0
        %210 = vmatpush1.msra.mxu0 0.0
        %211 = vmatprep.subr.mxu0 0.0
        %212 = vmatpush1.msra.mxu0 0.0
        %213 = vmatprep.subr.mxu0 0.0
        %214 = vmatpush1.msra.mxu0 0.0
        %215 = vmatprep.subr.mxu0 0.0
        %216 = vmatpush1.msra.mxu0 0.0
        %217 = vmatprep.subr.mxu0 0.0
        %218 = vmatpush1.msra.mxu0 0.0
        %219 = vmatprep.subr.mxu0 0.0
        %220 = vmatpush1.msra.mxu0 0.0
        %221 = vmatprep.subr.mxu0 0.0
        %222 = vmatpush1.msra.mxu0 0.0
        %223 = vmatprep.subr.mxu0 0.0
        %224 = vmatpush1.msra.mxu0 0.0
        %225 = vmatprep.subr.mxu0 0.0
        %226 = vmatpush1.msra.mxu0 0.0
        %227 = vmatprep.subr.mxu0 0.0
        %228 = vmatpush1.msra.mxu0 0.0
        %229 = vmatprep.subr.mxu0 0.0
        %230 = vmatpush1.msra.mxu0 0.0
        %231 = vmatprep.subr.mxu0 0.0
        %232 = vmatpush1.msra.mxu0 0.0
        %233 = vmatprep.subr.mxu0 0.0
        %234 = vmatpush1.msra.mxu0 0.0
        %235 = vmatprep.subr.mxu0 0.0
        %236 = vmatpush1.msra.mxu0 0.0
        %237 = vmatprep.subr.mxu0 0.0
        %238 = vmatpush1.msra.mxu0 0.0
        %239 = vmatprep.subr.mxu0 0.0
        %240 = vmatpush1.msra.mxu0 0.0
        %241 = vmatprep.subr.mxu0 0.0
        %242 = vmatpush1.msra.mxu0 0.0
        %243 = vmatprep.subr.mxu0 0.0
        %244 = vmatpush1.msra.mxu0 0.0
        %245 = vmatprep.subr.mxu0 0.0
        %246 = vmatpush1.msra.mxu0 0.0
        %247 = vmatprep.subr.mxu0 0.0
        %248 = vmatpush1.msra.mxu0 0.0
        %249 = vmatprep.subr.mxu0 0.0
        %250 = vmatpush1.msra.mxu0 0.0
        %251 = vmatprep.subr.mxu0 0.0
        %252 = vmatpush1.msra.mxu0 0.0
        %253 = vmatprep.subr.mxu0 0.0
        %254 = vmatpush1.msra.mxu0 0.0
        %255 = vmatprep.mubr.f32.mxu0 0.0
        %256 = vmatmul.mubr.f32.gmra.mrb[0].mxu0 %v189
        %v257 = vpop.f32.mrb[0].mxu0
        %v258 = vadd.f32 0.0, %v257
        %v259 = vpop.f32.mrb[0].mxu0
        %v260 = vadd.f32 0.0, %v259
        %261 = vdwg.mxu0
        %262 = vmatprep.subr.mxu0 0.0
        %263 = vmatpush1.msra.mxu0 %v177
        %264 = vmatprep.subr.mxu0 0.0
        %265 = vmatpush1.msra.mxu0 %v180
        %266 = vmatprep.subr.mxu0 0.0
        %267 = vmatpush1.msra.mxu0 %v183
        %268 = vmatprep.subr.mxu0 0.0
        %269 = vmatpush1.msra.mxu0 %v186
        %270 = vmatprep.subr.mxu0 0.0
        %271 = vmatpush1.msra.mxu0 0.0
        %272 = vmatprep.subr.mxu0 0.0
        %273 = vmatpush1.msra.mxu0 0.0
        %274 = vmatprep.subr.mxu0 0.0
        %275 = vmatpush1.msra.mxu0 0.0
        %276 = vmatprep.subr.mxu0 0.0
        %277 = vmatpush1.msra.mxu0 0.0
        %278 = vmatprep.subr.mxu0 0.0
        %279 = vmatpush1.msra.mxu0 0.0
        %280 = vmatprep.subr.mxu0 0.0
        %281 = vmatpush1.msra.mxu0 0.0
        %282 = vmatprep.subr.mxu0 0.0
        %283 = vmatpush1.msra.mxu0 0.0
        %284 = vmatprep.subr.mxu0 0.0
        %285 = vmatpush1.msra.mxu0 0.0
        %286 = vmatprep.subr.mxu0 0.0
        %287 = vmatpush1.msra.mxu0 0.0
        %288 = vmatprep.subr.mxu0 0.0
        %289 = vmatpush1.msra.mxu0 0.0
        %290 = vmatprep.subr.mxu0 0.0
        %291 = vmatpush1.msra.mxu0 0.0
        %292 = vmatprep.subr.mxu0 0.0
        %293 = vmatpush1.msra.mxu0 0.0
        %294 = vmatprep.subr.mxu0 0.0
        %295 = vmatpush1.msra.mxu0 0.0
        %296 = vmatprep.subr.mxu0 0.0
        %297 = vmatpush1.msra.mxu0 0.0
        %298 = vmatprep.subr.mxu0 0.0
        %299 = vmatpush1.msra.mxu0 0.0
        %300 = vmatprep.subr.mxu0 0.0
        %301 = vmatpush1.msra.mxu0 0.0
        %302 = vmatprep.subr.mxu0 0.0
        %303 = vmatpush1.msra.mxu0 0.0
        %304 = vmatprep.subr.mxu0 0.0
        %305 = vmatpush1.msra.mxu0 0.0
        %306 = vmatprep.subr.mxu0 0.0
        %307 = vmatpush1.msra.mxu0 0.0
        %308 = vmatprep.subr.mxu0 0.0
        %309 = vmatpush1.msra.mxu0 0.0
        %310 = vmatprep.subr.mxu0 0.0
        %311 = vmatpush1.msra.mxu0 0.0
        %312 = vmatprep.subr.mxu0 0.0
        %313 = vmatpush1.msra.mxu0 0.0
        %314 = vmatprep.subr.mxu0 0.0
        %315 = vmatpush1.msra.mxu0 0.0
        %316 = vmatprep.subr.mxu0 0.0
        %317 = vmatpush1.msra.mxu0 0.0
        %318 = vmatprep.subr.mxu0 0.0
        %319 = vmatpush1.msra.mxu0 0.0
        %320 = vmatprep.subr.mxu0 0.0
        %321 = vmatpush1.msra.mxu0 0.0
        %322 = vmatprep.subr.mxu0 0.0
        %323 = vmatpush1.msra.mxu0 0.0
        %324 = vmatprep.subr.mxu0 0.0
        %325 = vmatpush1.msra.mxu0 0.0
        %326 = vmatprep.mubr.f32.mxu0 0.0
        %327 = vmatmul.mubr.f32.gmra.mrb[0].mxu0 %v189
        %v328 = vpop.f32.mrb[0].mxu0
        %v329 = vadd.f32 0.0, %v328
        %v330 = vpop.f32.mrb[0].mxu0
        %331 = vdwg.mxu0
        %332 = vmatprep.subr.mxu0 0.0
        %333 = vmatpush1.xpose.msra.mxu0 %v260
        %334 = vmatprep.subr.mxu0 0.0
        %335 = vmatpush1.xpose.msra.mxu0 0.0
        %336 = vmatprep.subr.mxu0 0.0
        %337 = vmatpush1.xpose.msra.mxu0 0.0
        %338 = vmatprep.subr.mxu0 0.0
        %339 = vmatpush1.xpose.msra.mxu0 0.0
        %340 = vmatprep.subr.mxu0 0.0
        %341 = vmatpush1.xpose.msra.mxu0 0.0
        %342 = vmatprep.subr.mxu0 0.0
        %343 = vmatpush1.xpose.msra.mxu0 0.0
        %344 = vmatprep.subr.mxu0 0.0
        %345 = vmatpush1.xpose.msra.mxu0 0.0
        %346 = vmatprep.subr.mxu0 0.0
        %347 = vmatpush1.xpose.msra.mxu0 0.0
        %348 = vmatprep.subr.mxu0 0.0
        %349 = vmatpush1.xpose.msra.mxu0 0.0
        %350 = vmatprep.subr.mxu0 0.0
        %351 = vmatpush1.xpose.msra.mxu0 0.0
        %352 = vmatprep.subr.mxu0 0.0
        %353 = vmatpush1.xpose.msra.mxu0 0.0
        %354 = vmatprep.subr.mxu0 0.0
        %355 = vmatpush1.xpose.msra.mxu0 0.0
        %356 = vmatprep.subr.mxu0 0.0
        %357 = vmatpush1.xpose.msra.mxu0 0.0
        %358 = vmatprep.subr.mxu0 0.0
        %359 = vmatpush1.xpose.msra.mxu0 0.0
        %360 = vmatprep.subr.mxu0 0.0
        %361 = vmatpush1.xpose.msra.mxu0 0.0
        %362 = vmatprep.subr.mxu0 0.0
        %363 = vmatpush1.xpose.msra.mxu0 0.0
        %364 = vmatprep.subr.mxu0 0.0
        %365 = vmatpush1.xpose.msra.mxu0 0.0
        %366 = vmatprep.subr.mxu0 0.0
        %367 = vmatpush1.xpose.msra.mxu0 0.0
        %368 = vmatprep.subr.mxu0 0.0
        %369 = vmatpush1.xpose.msra.mxu0 0.0
        %370 = vmatprep.subr.mxu0 0.0
        %371 = vmatpush1.xpose.msra.mxu0 0.0
        %372 = vmatprep.subr.mxu0 0.0
        %373 = vmatpush1.xpose.msra.mxu0 0.0
        %374 = vmatprep.subr.mxu0 0.0
        %375 = vmatpush1.xpose.msra.mxu0 0.0
        %376 = vmatprep.subr.mxu0 0.0
        %377 = vmatpush1.xpose.msra.mxu0 0.0
        %378 = vmatprep.subr.mxu0 0.0
        %379 = vmatpush1.xpose.msra.mxu0 0.0
        %380 = vmatprep.subr.mxu0 0.0
        %381 = vmatpush1.xpose.msra.mxu0 0.0
        %382 = vmatprep.subr.mxu0 0.0
        %383 = vmatpush1.xpose.msra.mxu0 0.0
        %384 = vmatprep.subr.mxu0 0.0
        %385 = vmatpush1.xpose.msra.mxu0 0.0
        %386 = vmatprep.subr.mxu0 0.0
        %387 = vmatpush1.xpose.msra.mxu0 0.0
        %388 = vmatprep.subr.mxu0 0.0
        %389 = vmatpush1.xpose.msra.mxu0 0.0
        %390 = vmatprep.subr.mxu0 0.0
        %391 = vmatpush1.xpose.msra.mxu0 0.0
        %392 = vmatprep.subr.mxu0 0.0
        %393 = vmatpush1.xpose.msra.mxu0 0.0
        %394 = vmatprep.subr.mxu0 0.0
        %395 = vmatpush1.xpose.msra.mxu0 0.0
        %396 = vmatprep.mubr.f32.mxu0 0.0
        %397 = vmatmul.mubr.f32.gmra.mrb[0].mxu0 %v258
        %v398 = vpop.f32.mrb[0].mxu0
        %v399 = vadd.f32 0.0, %v398
        %v400 = vpop.f32.mrb[0].mxu0
        %401 = vdwg.mxu0
        %v402 = vlaneseq
        %v403 = vshrl.u32 %v402, 7
        %v404 = vlaneseq
        %v405 = vand.u32 %v404, 127
        %vm406 = vcmp.ge.s32.totalorder %v403, %v405
        %v407 = vsel %vm406, %v399, -1e+30
        %vm408 = vcmask 64512
        %v409 = vsel %vm408, %v407, -inf
        %410 = vmax.xlane.f32.xlu0 %v409
        %v411 = vpop.xlane.xlu0 %410
        %v412 = vsub.f32 %v407, %v411
        %v413 = vmul.f32 %v412, 1.442695
        %v414 = vpow.pop %v413
        %v415 = vsel %vm408, %v414, 0.0
        %416 = vadd.xlane.f32.xlu0 %v415
        %v417 = vpop.xlane.xlu0 %416
        %v418 = vrcp.pop %v417
        %v419 = vmul.f32 %v414, %v418
        %v421 = vsel %vm408, %v419, 0
        %423 = vmatprep.subr.mxu0 0.0
        %424 = vmatpush1.msra.mxu0 %v329
        %425 = vmatprep.subr.mxu0 0.0
        %426 = vmatpush1.msra.mxu0 0.0
        %427 = vmatprep.subr.mxu0 0.0
        %428 = vmatpush1.msra.mxu0 0.0
        %429 = vmatprep.subr.mxu0 0.0
        %430 = vmatpush1.msra.mxu0 0.0
        %431 = vmatprep.subr.mxu0 0.0
        %432 = vmatpush1.msra.mxu0 0.0
        %433 = vmatprep.subr.mxu0 0.0
        %434 = vmatpush1.msra.mxu0 0.0
        %435 = vmatprep.subr.mxu0 0.0
        %436 = vmatpush1.msra.mxu0 0.0
        %437 = vmatprep.subr.mxu0 0.0
        %438 = vmatpush1.msra.mxu0 0.0
        %439 = vmatprep.subr.mxu0 0.0
        %440 = vmatpush1.msra.mxu0 0.0
        %441 = vmatprep.subr.mxu0 0.0
        %442 = vmatpush1.msra.mxu0 0.0
        %443 = vmatprep.subr.mxu0 0.0
        %444 = vmatpush1.msra.mxu0 0.0
        %445 = vmatprep.subr.mxu0 0.0
        %446 = vmatpush1.msra.mxu0 0.0
        %447 = vmatprep.subr.mxu0 0.0
        %448 = vmatpush1.msra.mxu0 0.0
        %449 = vmatprep.subr.mxu0 0.0
        %450 = vmatpush1.msra.mxu0 0.0
        %451 = vmatprep.subr.mxu0 0.0
        %452 = vmatpush1.msra.mxu0 0.0
        %453 = vmatprep.subr.mxu0 0.0
        %454 = vmatpush1.msra.mxu0 0.0
        %455 = vmatprep.subr.mxu0 0.0
        %456 = vmatpush1.msra.mxu0 0.0
        %457 = vmatprep.subr.mxu0 0.0
        %458 = vmatpush1.msra.mxu0 0.0
        %459 = vmatprep.subr.mxu0 0.0
        %460 = vmatpush1.msra.mxu0 0.0
        %461 = vmatprep.subr.mxu0 0.0
        %462 = vmatpush1.msra.mxu0 0.0
        %463 = vmatprep.subr.mxu0 0.0
        %464 = vmatpush1.msra.mxu0 0.0
        %465 = vmatprep.subr.mxu0 0.0
        %466 = vmatpush1.msra.mxu0 0.0
        %467 = vmatprep.subr.mxu0 0.0
        %468 = vmatpush1.msra.mxu0 0.0
        %469 = vmatprep.subr.mxu0 0.0
        %470 = vmatpush1.msra.mxu0 0.0
        %471 = vmatprep.subr.mxu0 0.0
        %472 = vmatpush1.msra.mxu0 0.0
        %473 = vmatprep.subr.mxu0 0.0
        %474 = vmatpush1.msra.mxu0 0.0
        %475 = vmatprep.subr.mxu0 0.0
        %476 = vmatpush1.msra.mxu0 0.0
        %477 = vmatprep.subr.mxu0 0.0
        %478 = vmatpush1.msra.mxu0 0.0
        %479 = vmatprep.subr.mxu0 0.0
        %480 = vmatpush1.msra.mxu0 0.0
        %481 = vmatprep.subr.mxu0 0.0
        %482 = vmatpush1.msra.mxu0 0.0
        %483 = vmatprep.subr.mxu0 0.0
        %484 = vmatpush1.msra.mxu0 0.0
        %485 = vmatprep.subr.mxu0 0.0
        %486 = vmatpush1.msra.mxu0 0.0
        %487 = vmatprep.mubr.f32.mxu0 0.0
        %488 = vmatmul.mubr.f32.gmra.mrb[0].mxu0 %v421
        %v489 = vpop.f32.mrb[0].mxu0
        %v490 = vadd.f32 0.0, %v489
        %v491 = vpop.f32.mrb[0].mxu0
        %492 = vdwg.mxu0
        %493 = vst [vmem:[%s173] sm:$0xff] %v490
        %s494 = sand.u32 %s75, 1
        %s495 = scalar_lea.sflag [#allocation4], %s494
        %s496 = sand.u32 %s75, 1
        %s497 = smul.addr %s496, 8
        %s498 = scalar_lea.vmem [#allocation7], %s497
        // Predicated region
        $region37: #{tpu_custom_call.1} parent=27 // pred_check
          %p499 = pneg %p85
        $region38: #{tpu_custom_call.1} parent=27 // pred_check_branch
          %501 = sbr.rel (%p499) target = $region40
        $region39: #{tpu_custom_call.1} parent=27 // pred_region
          %s503 = ssub.s32 128, 128
          %504 = vsyncadd %s495, %s503
          %s505 = smul.addr %s20, 128
          %s506 = scalar_lea.hbm %s2, %s505
          %s508 = sshll.u32 %s498, 4
          %s509 = int_to_ptr.vmem [resolvable:$true] %s508
          %511 = dma.vmem_to_hbm [thread:$0]  %s509, 128, %s506, %s495
        $region40: #{tpu_custom_call.1} parent=27 // pred_fallthru
          _
      $region28: #{tpu_custom_call.1} parent=5 // pred_fallthru
        _
      %p512 = scmp.le.s32.totalorder 2, %s15
      // Predicated region
      $region41: #{tpu_custom_call.1} parent=5 // pred_check
        %p513 = pneg %p512
      $region42: #{tpu_custom_call.1} parent=5 // pred_check_branch
        %515 = sbr.rel (%p513) target = $region44
      $region43: #{tpu_custom_call.1} parent=5 // pred_region
        %s516 = ssub.s32 %s15, 2
        // Predicated region
        $region45: #{tpu_custom_call.1} parent=43 // pred_check
          %p517 = pneg %p91
        $region46: #{tpu_custom_call.1} parent=43 // pred_check_branch
          %519 = sbr.rel (%p517) target = $region48
        $region47: #{tpu_custom_call.1} parent=43 // pred_region
          %s520 = sand.u32 %s76, 1
          %s521 = scalar_lea.sflag [#allocation4], %s520
          %s522 = sand.u32 %s76, 1
          %s523 = smul.addr %s522, 8
          %s524 = scalar_lea.vmem [#allocation7], %s523
          %525 = dma.done %s521, 128
        $region48: #{tpu_custom_call.1} parent=43 // pred_fallthru
          _
      $region44: #{tpu_custom_call.1} parent=5 // pred_fallthru
        _
    $region6: #{tpu_custom_call.1} parent=1 // loop_footer
      %s19 = sadd.s32 1, %s15
    $region7: #{tpu_custom_call.1} parent=1 // loop_footer_branch
      %14 = sbr.rel target = $region3
    $region8: #{tpu_custom_call.1} parent=1 // loop_exit
      _
    %526 = vsyncpa [#allocation3], 1
    %s527 = scalar_lea.sflag [#allocation3], 1
    %528 = vsyncpa %s527, 1
    %529 = vsyncpa [#allocation6], 1
    %530 = vsyncpa [#allocation4], 1
    %s531 = scalar_lea.sflag [#allocation4], 1
    %532 = vsyncpa %s531, 1

</llo_original>
